<compile_context>
chip_gen: v7x
topology: tpu7x:2x2x1
jax: 0.10.0
libtpu: 0.0.40
codegen_flags: <defaults>
</compile_context>

<pallas_src>
import numpy as np
import jax
import jax.numpy as jnp
from jax.experimental import pallas as pl
from jax.experimental.pallas import tpu as pltpu

_F_IN = 20     # primitive parameter count per row
_F_OUT = 16    # output columns: 3 cen_mean + 9 Vx + 4 zero pad


def _build_weight():
    """Static [20, 16] matrix encoding get_mean + getVx as a single matmul."""
    w = np.zeros((_F_IN, _F_OUT), dtype=np.float32)
    # cen_mean[j] = trans[j] + 0.5 * shape[j]; trans = pred[:,13:16], shape = pred[:,10:13]
    for j in range(3):
        w[13 + j, j] = 1.0
        w[10 + j, j] = 0.5
    # Vx (row-major) from Rv = pred[:,16:19]:
    #   [  0, -r2,  r1,
    #     r2,   0, -r0,
    #    -r1,  r0,   0 ]
    w[18, 4] = -1.0     # -r2
    w[17, 5] = 1.0      #  r1
    w[18, 6] = 1.0      #  r2
    w[16, 8] = -1.0     # -r0
    w[17, 9] = -1.0     # -r1
    w[16, 10] = 1.0     #  r0
    # columns 3, 7, 11, 12..15 stay zero
    return jnp.asarray(w)


def bbox_criterion_kernel(pred_ref, w_ref, out_ref):
    # One MXU matmul replaces all column slices / lane shuffles.  W entries are in
    # {0, +-1, 0.5}, so HIGHEST precision keeps the result bit-exact vs. f32 math.
    out_ref[...] = jnp.dot(
        pred_ref[...], w_ref[...],
        preferred_element_type=jnp.float32,
        precision=jax.lax.Precision.HIGHEST,
    )


def _round_up(x, m):
    return (x + m - 1) // m * m


def _reference_jax(pred_out):
    """Plain-JAX formulation of the same helper math (small-batch path + checks)."""
    pred_out = pred_out.astype(jnp.float32)
    shape = pred_out[:, 10:13]
    trans = pred_out[:, 13:16]
    rv = pred_out[:, 16:19]
    cen = trans + 0.5 * shape
    B = pred_out.shape[0]
    z = jnp.zeros((B,), pred_out.dtype)
    vx = jnp.stack(
        [z, -rv[:, 2], rv[:, 1],
         rv[:, 2], z, -rv[:, 0],
         -rv[:, 1], rv[:, 0], z],
        axis=-1,
    )
    return jnp.concatenate([cen, vx, jnp.zeros((B, 4), pred_out.dtype)], axis=-1)


def bbox_criterion_forward(pred_out, bbox=None, existence=None, *,
                           rows_per_block=4096, min_pallas_rows=512, use_pallas=None):
    """Pallas implementation of BBoxCriterion.forward's computable portion.

    Returns a [B, 16] array: [:, 0:3] = get_mean(...), [:, 3:12] = getVx(Rv) flattened,
    [:, 12:16] = 0.  (The reference forward itself returns None; this exposes the
    kernel's intermediates.  bbox / existence are accepted but unused, exactly
    mirroring the reference forward, and are never DMA'd.)
    """
    del bbox, existence  # never read by the reference forward -> never DMA'd

    B, F = pred_out.shape
    assert F == _F_IN, "pred_out must carry 20 primitive parameters per row"
    pred_out = pred_out.astype(jnp.float32)

    if use_pallas is None:
        use_pallas = B >= min_pallas_rows
    if not use_pallas:
        # Tiny batch: a pallas_call is pure launch/DMA overhead for ~1 KB of data.
        return _reference_jax(pred_out)

    # Row tile: multiple of 8 sublanes.  4096 amortizes the ~0.35 us per-step overhead;
    # the (tb, 20) input block pads to 128 lanes in VMEM, so per step this is
    # ~2 MiB input + ~0.25 MiB output per buffer -> well inside scoped VMEM everywhere,
    # and B >= 2*tb keeps both v7x TensorCores busy via the "parallel" axis.
    tb = min(rows_per_block, _round_up(B, 8))
    grid = (pl.cdiv(B, tb),)  # ragged last block: Pallas masks the out-of-range rows

    w = _build_weight()

    out = pl.pallas_call(
        bbox_criterion_kernel,
        out_shape=jax.ShapeDtypeStruct((B, _F_OUT), jnp.float32),
        grid=grid,
        in_specs=[
            pl.BlockSpec((tb, _F_IN), lambda i: (i, 0)),
            pl.BlockSpec((_F_IN, _F_OUT), lambda i: (0, 0)),  # constant W, fetched once
        ],
        out_specs=pl.BlockSpec((tb, _F_OUT), lambda i: (i, 0)),
        compiler_params=pltpu.CompilerParams(
            dimension_semantics=("parallel",),
        ),
    )(pred_out, w)

    return out


if __name__ == "__main__":
    key = jax.random.PRNGKey(0)
    k1, k2, k3, k4 = jax.random.split(key, 4)

    # Small shapes consistent with the module: a batch of primitives with 20 params each,
    # 8 bbox corners (xyz) per primitive, and an existence flag per primitive.
    B = 8
    pred_out = jax.random.normal(k1, (B, _F_IN), dtype=jnp.float32)
    bbox = jax.random.normal(k2, (B, 8, 3), dtype=jnp.float32)
    existence = (jax.random.uniform(k3, (B,)) > 0.5).astype(jnp.float32)

    # 1) Force the Pallas path at the demo size (single ragged-free block).
    out = bbox_criterion_forward(pred_out, bbox, existence, use_pallas=True)
    out = jax.block_until_ready(out)
    ref = _reference_jax(pred_out)
    assert out.shape == (B, _F_OUT)
    assert jnp.allclose(out, ref, atol=1e-5, rtol=1e-5), "kernel mismatch vs reference"

    # 2) Multi-block grid with a ragged (masked) last block.
    B2 = 300
    pred2 = jax.random.normal(k4, (B2, _F_IN), dtype=jnp.float32)
    out2 = bbox_criterion_forward(pred2, use_pallas=True, rows_per_block=128)
    out2 = jax.block_until_ready(out2)
    ref2 = _reference_jax(pred2)
    assert out2.shape == (B2, _F_OUT)
    assert jnp.allclose(out2, ref2, atol=1e-5, rtol=1e-5), "ragged-block mismatch"

    # 3) Default auto-dispatch (small batch -> plain-JAX fallback) still matches.
    out3 = jax.block_until_ready(bbox_criterion_forward(pred_out, bbox, existence))
    assert jnp.allclose(out3, ref, atol=1e-5, rtol=1e-5), "fallback mismatch"

    print("KERNEL_OK")
</pallas_src>

<mosaic_0001>
module attributes {stable_mosaic.version = 11 : i64} {
  func.func @bbox_criterion_kernel(%arg0: i32, %arg1: memref<8x20xf32, #tpu.memory_space<vmem>>, %arg2: memref<20x16xf32, #tpu.memory_space<vmem>>, %arg3: memref<8x16xf32, #tpu.memory_space<vmem>>) attributes {dimension_semantics = [#tpu.dimension_semantics<parallel>], iteration_bounds = array<i64: 1>, scalar_prefetch = 0 : i64, scratch_operands = 0 : i64, tpu.core_type = #tpu.core_type<tc>, window_params = [{transform_indices = @transform_0, window_bounds = array<i64: 8, 20>}, {pipeline_mode = #tpu.pipeline_mode<synchronous>, transform_indices = @transform_1, window_bounds = array<i64: 20, 16>}, {transform_indices = @transform_2, window_bounds = array<i64: 8, 16>}]} {
    %c0 = arith.constant 0 : index
    %c0_0 = arith.constant 0 : index
    %0 = vector.load %arg1[%c0, %c0_0] : memref<8x20xf32, #tpu.memory_space<vmem>>, vector<8x20xf32>
    %c0_1 = arith.constant 0 : index
    %c0_2 = arith.constant 0 : index
    %1 = vector.load %arg2[%c0_1, %c0_2] : memref<20x16xf32, #tpu.memory_space<vmem>>, vector<20x16xf32>
    %cst = arith.constant dense<0.000000e+00> : vector<8x16xf32>
    %2 = tpu.matmul %0, %1, %cst {dimension_numbers = #tpu.dot_dimension_numbers<[1], [0], [0], [1], [0, 0, 1, 1], [], []>, precision = #tpu.contract_precision<fp32>} : vector<8x20xf32>, vector<20x16xf32>, vector<8x16xf32> -> vector<8x16xf32>
    %c0_3 = arith.constant 0 : index
    %c0_4 = arith.constant 0 : index
    %3 = vector.load %arg3[%c0_3, %c0_4] : memref<8x16xf32, #tpu.memory_space<vmem>>, vector<8x16xf32>
    tpu.vector_store %arg3[%c0_3, %c0_4], %2 {strides = array<i32>} : memref<8x16xf32, #tpu.memory_space<vmem>>, vector<8x16xf32>,
    return
  }
  func.func @transform_0(%arg0: i32) -> (i32, i32) {
    %c0_i32 = arith.constant 0 : i32
    %c0_i32_0 = arith.constant 0 : i32
    return %arg0, %c0_i32 : i32, i32
  }
  func.func @transform_1(%arg0: i32) -> (i32, i32) {
    %c0_i32 = arith.constant 0 : i32
    %c0_i32_0 = arith.constant 0 : i32
    %c0_i32_1 = arith.constant 0 : i32
    return %c0_i32, %c0_i32_0 : i32, i32
  }
  func.func @transform_2(%arg0: i32) -> (i32, i32) {
    %c0_i32 = arith.constant 0 : i32
    %c0_i32_0 = arith.constant 0 : i32
    return %arg0, %c0_i32 : i32, i32
  }
}

</mosaic_0001>

<llo_original>
// kernel: tpu_custom_call.1
$region0: #{tpu_custom_call.1}
  #allocation0 [shape = 'u32[]', space=smem, size = 0x4, offset = 0x4, fixed_abs, tag = 'smem constant byte address 0x4 - core index']
  #allocation1 [shape = 'u32[144,128]{1,0:T(1,128)}', space=vmem, size = 0x12000, scoped, tag = 'internal scratch']
  %s0 = inlined_call_operand.vmem [shape: f32[8,20], index: 0, kind: input, shape index: {}]
  %s1 = inlined_call_operand.vmem [shape: f32[20,16], index: 1, kind: input, shape index: {}]
  %s2 = inlined_call_operand.hbm [shape: f32[8,16], index: 2, kind: output, shape index: {}]
  %s3 = sld [smem:[#allocation0]]
  $region18: #{tpu_custom_call.1} parent=0
    _
  %s5 = ssub.s32 1, %s3
  %s6 = scalar_select 0, %s5, %s3
  $region1: #{tpu_custom_call.1} parent=0
    #allocation2 [shape = 'u8[4096]{0}', space=vmem, size = 0x1000, scoped, tag = 'output window, operand 0, single buffered']
    #allocation3 [shape = 's32[1]{0}', space=sflag, size = 0x4, scoped, tag = 'scoped memory for tpu_custom_call.1']
    %7 = vsyncpa [#allocation3], 0
    // Predicated region
    $region2: #{tpu_custom_call.1} parent=1 // pred_check
      _
    $region3: #{tpu_custom_call.1} parent=1 // pred_check_branch
      %9 = sbr.rel (0) target = $region5
    $region4: #{tpu_custom_call.1} parent=1 // pred_region
      _
    $region5: #{tpu_custom_call.1} parent=1 // pred_fallthru
      _
    // Predicated region
    $region6: #{tpu_custom_call.1} parent=1 // pred_check
      _
    $region7: #{tpu_custom_call.1} parent=1 // pred_check_branch
      %11 = sbr.rel (0) target = $region9
    $region8: #{tpu_custom_call.1} parent=1 // pred_region
      _
    $region9: #{tpu_custom_call.1} parent=1 // pred_fallthru
      _
    %v12 = vld [vmem:[%s0] sm:$0xff]
    %v13 = vld [vmem:[%s1] sm:$0xff]
    %v14 = vld [vmem:[%s1 + $0x8] sm:$0xff]
    %v15 = vld [vmem:[%s1 + $0x10] sm:$0xf]
    %vm16 = vcmask 162816
    %v18 = vsel %vm16, %v12, 0
    %vm20 = vcmask 1043456
    %v22 = vsel %vm20, %v15, 0
    %24 = vmatprep.subr.mxu0 0.0
    %v25 = vand.u32 %v13, 4294901760
    %26 = vmatpush1.msra.mxu0 %v25
    %27 = vmatprep.subr.mxu0 0.0
    %v28 = vand.u32 %v14, 4294901760
    %29 = vmatpush1.msra.mxu0 %v28
    %30 = vmatprep.subr.mxu0 0.0
    %v31 = vand.u32 %v22, 4294901760
    %32 = vmatpush1.msra.mxu0 %v31
    %33 = vmatprep.subr.mxu0 0.0
    %34 = vmatpush1.msra.mxu0 0.0
    %35 = vmatprep.subr.mxu0 0.0
    %36 = vmatpush1.msra.mxu0 0.0
    %37 = vmatprep.subr.mxu0 0.0
    %38 = vmatpush1.msra.mxu0 0.0
    %39 = vmatprep.subr.mxu0 0.0
    %40 = vmatpush1.msra.mxu0 0.0
    %41 = vmatprep.subr.mxu0 0.0
    %42 = vmatpush1.msra.mxu0 0.0
    %43 = vmatprep.subr.mxu0 0.0
    %44 = vmatpush1.msra.mxu0 0.0
    %45 = vmatprep.subr.mxu0 0.0
    %46 = vmatpush1.msra.mxu0 0.0
    %47 = vmatprep.subr.mxu0 0.0
    %48 = vmatpush1.msra.mxu0 0.0
    %49 = vmatprep.subr.mxu0 0.0
    %50 = vmatpush1.msra.mxu0 0.0
    %51 = vmatprep.subr.mxu0 0.0
    %52 = vmatpush1.msra.mxu0 0.0
    %53 = vmatprep.subr.mxu0 0.0
    %54 = vmatpush1.msra.mxu0 0.0
    %55 = vmatprep.subr.mxu0 0.0
    %56 = vmatpush1.msra.mxu0 0.0
    %57 = vmatprep.subr.mxu0 0.0
    %58 = vmatpush1.msra.mxu0 0.0
    %59 = vmatprep.subr.mxu0 0.0
    %60 = vmatpush1.msra.mxu0 0.0
    %61 = vmatprep.subr.mxu0 0.0
    %62 = vmatpush1.msra.mxu0 0.0
    %63 = vmatprep.subr.mxu0 0.0
    %64 = vmatpush1.msra.mxu0 0.0
    %65 = vmatprep.subr.mxu0 0.0
    %66 = vmatpush1.msra.mxu0 0.0
    %67 = vmatprep.subr.mxu0 0.0
    %68 = vmatpush1.msra.mxu0 0.0
    %69 = vmatprep.subr.mxu0 0.0
    %70 = vmatpush1.msra.mxu0 0.0
    %71 = vmatprep.subr.mxu0 0.0
    %72 = vmatpush1.msra.mxu0 0.0
    %73 = vmatprep.subr.mxu0 0.0
    %74 = vmatpush1.msra.mxu0 0.0
    %75 = vmatprep.subr.mxu0 0.0
    %76 = vmatpush1.msra.mxu0 0.0
    %77 = vmatprep.subr.mxu0 0.0
    %78 = vmatpush1.msra.mxu0 0.0
    %79 = vmatprep.subr.mxu0 0.0
    %80 = vmatpush1.msra.mxu0 0.0
    %81 = vmatprep.subr.mxu0 0.0
    %82 = vmatpush1.msra.mxu0 0.0
    %83 = vmatprep.subr.mxu0 0.0
    %84 = vmatpush1.msra.mxu0 0.0
    %85 = vmatprep.subr.mxu0 0.0
    %86 = vmatpush1.msra.mxu0 0.0
    %87 = vmatprep.subr.mxu0 0.0
    %88 = vmatpush1.msra.mxu0 0.0
    %89 = vmatprep.subr.mxu0 0.0
    %90 = vmatpush1.msra.mxu0 0.0
    %91 = vmatprep.mubr.f32.mxu0 0.0
    %v92 = vand.u32 %v18, 4294901760
    %v93 = vsub.f32 %v18, %v92
    %v94 = vand.u32 %v93, 4294901760
    %v95 = vsub.f32 %v93, %v94
    %v96 = vand.u32 %v95, 4294901760
    %97 = vmatmul.mubr.f32.gmra.mrb[0].mxu0 %v96
    %v98 = vpop.f32.mrb[0].mxu0
    %v99 = vadd.f32 0.0, %v98
    %v100 = vpop.f32.mrb[0].mxu0
    %101 = vdwg.mxu0
    %102 = vmatprep.subr.mxu0 0.0
    %v103 = vand.u32 %v13, 4294901760
    %v104 = vsub.f32 %v13, %v103
    %v105 = vand.u32 %v104, 4294901760
    %v106 = vsub.f32 %v104, %v105
    %v107 = vand.u32 %v106, 4294901760
    %108 = vmatpush1.msra.mxu0 %v107
    %109 = vmatprep.subr.mxu0 0.0
    %v110 = vand.u32 %v14, 4294901760
    %v111 = vsub.f32 %v14, %v110
    %v112 = vand.u32 %v111, 4294901760
    %v113 = vsub.f32 %v111, %v112
    %v114 = vand.u32 %v113, 4294901760
    %115 = vmatpush1.msra.mxu0 %v114
    %116 = vmatprep.subr.mxu0 0.0
    %v117 = vand.u32 %v22, 4294901760
    %v118 = vsub.f32 %v22, %v117
    %v119 = vand.u32 %v118, 4294901760
    %v120 = vsub.f32 %v118, %v119
    %v121 = vand.u32 %v120, 4294901760
    %122 = vmatpush1.msra.mxu0 %v121
    %123 = vmatprep.subr.mxu0 0.0
    %124 = vmatpush1.msra.mxu0 0.0
    %125 = vmatprep.subr.mxu0 0.0
    %126 = vmatpush1.msra.mxu0 0.0
    %127 = vmatprep.subr.mxu0 0.0
    %128 = vmatpush1.msra.mxu0 0.0
    %129 = vmatprep.subr.mxu0 0.0
    %130 = vmatpush1.msra.mxu0 0.0
    %131 = vmatprep.subr.mxu0 0.0
    %132 = vmatpush1.msra.mxu0 0.0
    %133 = vmatprep.subr.mxu0 0.0
    %134 = vmatpush1.msra.mxu0 0.0
    %135 = vmatprep.subr.mxu0 0.0
    %136 = vmatpush1.msra.mxu0 0.0
    %137 = vmatprep.subr.mxu0 0.0
    %138 = vmatpush1.msra.mxu0 0.0
    %139 = vmatprep.subr.mxu0 0.0
    %140 = vmatpush1.msra.mxu0 0.0
    %141 = vmatprep.subr.mxu0 0.0
    %142 = vmatpush1.msra.mxu0 0.0
    %143 = vmatprep.subr.mxu0 0.0
    %144 = vmatpush1.msra.mxu0 0.0
    %145 = vmatprep.subr.mxu0 0.0
    %146 = vmatpush1.msra.mxu0 0.0
    %147 = vmatprep.subr.mxu0 0.0
    %148 = vmatpush1.msra.mxu0 0.0
    %149 = vmatprep.subr.mxu0 0.0
    %150 = vmatpush1.msra.mxu0 0.0
    %151 = vmatprep.subr.mxu0 0.0
    %152 = vmatpush1.msra.mxu0 0.0
    %153 = vmatprep.subr.mxu0 0.0
    %154 = vmatpush1.msra.mxu0 0.0
    %155 = vmatprep.subr.mxu0 0.0
    %156 = vmatpush1.msra.mxu0 0.0
    %157 = vmatprep.subr.mxu0 0.0
    %158 = vmatpush1.msra.mxu0 0.0
    %159 = vmatprep.subr.mxu0 0.0
    %160 = vmatpush1.msra.mxu0 0.0
    %161 = vmatprep.subr.mxu0 0.0
    %162 = vmatpush1.msra.mxu0 0.0
    %163 = vmatprep.subr.mxu0 0.0
    %164 = vmatpush1.msra.mxu0 0.0
    %165 = vmatprep.subr.mxu0 0.0
    %166 = vmatpush1.msra.mxu0 0.0
    %167 = vmatprep.subr.mxu0 0.0
    %168 = vmatpush1.msra.mxu0 0.0
    %169 = vmatprep.subr.mxu0 0.0
    %170 = vmatpush1.msra.mxu0 0.0
    %171 = vmatprep.subr.mxu0 0.0
    %172 = vmatpush1.msra.mxu0 0.0
    %173 = vmatprep.subr.mxu0 0.0
    %174 = vmatpush1.msra.mxu0 0.0
    %175 = vmatprep.subr.mxu0 0.0
    %176 = vmatpush1.msra.mxu0 0.0
    %177 = vmatprep.subr.mxu0 0.0
    %178 = vmatpush1.msra.mxu0 0.0
    %179 = vmatprep.subr.mxu0 0.0
    %180 = vmatpush1.msra.mxu0 0.0
    %181 = vmatprep.mubr.f32.mxu0 0.0
    %v182 = vand.u32 %v18, 4294901760
    %183 = vmatmul.mubr.f32.gmra.mrb[0].mxu0 %v182
    %v184 = vpop.f32.mrb[0].mxu0
    %v185 = vadd.f32 %v99, %v184
    %v186 = vpop.f32.mrb[0].mxu0
    %187 = vdwg.mxu0
    %188 = vmatprep.subr.mxu0 0.0
    %v189 = vand.u32 %v13, 4294901760
    %v190 = vsub.f32 %v13, %v189
    %191 = vmatpush1.msra.mxu0 %v190
    %192 = vmatprep.subr.mxu0 0.0
    %v193 = vand.u32 %v14, 4294901760
    %v194 = vsub.f32 %v14, %v193
    %195 = vmatpush1.msra.mxu0 %v194
    %196 = vmatprep.subr.mxu0 0.0
    %v197 = vand.u32 %v22, 4294901760
    %v198 = vsub.f32 %v22, %v197
    %199 = vmatpush1.msra.mxu0 %v198
    %200 = vmatprep.subr.mxu0 0.0
    %201 = vmatpush1.msra.mxu0 0.0
    %202 = vmatprep.subr.mxu0 0.0
    %203 = vmatpush1.msra.mxu0 0.0
    %204 = vmatprep.subr.mxu0 0.0
    %205 = vmatpush1.msra.mxu0 0.0
    %206 = vmatprep.subr.mxu0 0.0
    %207 = vmatpush1.msra.mxu0 0.0
    %208 = vmatprep.subr.mxu0 0.0
    %209 = vmatpush1.msra.mxu0 0.0
    %210 = vmatprep.subr.mxu0 0.0
    %211 = vmatpush1.msra.mxu0 0.0
    %212 = vmatprep.subr.mxu0 0.0
    %213 = vmatpush1.msra.mxu0 0.0
    %214 = vmatprep.subr.mxu0 0.0
    %215 = vmatpush1.msra.mxu0 0.0
    %216 = vmatprep.subr.mxu0 0.0
    %217 = vmatpush1.msra.mxu0 0.0
    %218 = vmatprep.subr.mxu0 0.0
    %219 = vmatpush1.msra.mxu0 0.0
    %220 = vmatprep.subr.mxu0 0.0
    %221 = vmatpush1.msra.mxu0 0.0
    %222 = vmatprep.subr.mxu0 0.0
    %223 = vmatpush1.msra.mxu0 0.0
    %224 = vmatprep.subr.mxu0 0.0
    %225 = vmatpush1.msra.mxu0 0.0
    %226 = vmatprep.subr.mxu0 0.0
    %227 = vmatpush1.msra.mxu0 0.0
    %228 = vmatprep.subr.mxu0 0.0
    %229 = vmatpush1.msra.mxu0 0.0
    %230 = vmatprep.subr.mxu0 0.0
    %231 = vmatpush1.msra.mxu0 0.0
    %232 = vmatprep.subr.mxu0 0.0
    %233 = vmatpush1.msra.mxu0 0.0
    %234 = vmatprep.subr.mxu0 0.0
    %235 = vmatpush1.msra.mxu0 0.0
    %236 = vmatprep.subr.mxu0 0.0
    %237 = vmatpush1.msra.mxu0 0.0
    %238 = vmatprep.subr.mxu0 0.0
    %239 = vmatpush1.msra.mxu0 0.0
    %240 = vmatprep.subr.mxu0 0.0
    %241 = vmatpush1.msra.mxu0 0.0
    %242 = vmatprep.subr.mxu0 0.0
    %243 = vmatpush1.msra.mxu0 0.0
    %244 = vmatprep.subr.mxu0 0.0
    %245 = vmatpush1.msra.mxu0 0.0
    %246 = vmatprep.subr.mxu0 0.0
    %247 = vmatpush1.msra.mxu0 0.0
    %248 = vmatprep.subr.mxu0 0.0
    %249 = vmatpush1.msra.mxu0 0.0
    %250 = vmatprep.subr.mxu0 0.0
    %251 = vmatpush1.msra.mxu0 0.0
    %252 = vmatprep.subr.mxu0 0.0
    %253 = vmatpush1.msra.mxu0 0.0
    %254 = vmatprep.subr.mxu0 0.0
    %255 = vmatpush1.msra.mxu0 0.0
    %256 = vmatprep.subr.mxu0 0.0
    %257 = vmatpush1.msra.mxu0 0.0
    %258 = vmatprep.mubr.f32.mxu0 0.0
    %v259 = vand.u32 %v18, 4294901760
    %v260 = vsub.f32 %v18, %v259
    %261 = vmatmul.mubr.f32.gmra.mrb[0].mxu0 %v260
    %v262 = vpop.f32.mrb[0].mxu0
    %v263 = vadd.f32 %v185, %v262
    %v264 = vpop.f32.mrb[0].mxu0
    %265 = vdwg.mxu0
    %266 = vmatprep.subr.mxu0 0.0
    %v267 = vand.u32 %v13, 4294901760
    %268 = vmatpush1.msra.mxu0 %v267
    %269 = vmatprep.subr.mxu0 0.0
    %v270 = vand.u32 %v14, 4294901760
    %271 = vmatpush1.msra.mxu0 %v270
    %272 = vmatprep.subr.mxu0 0.0
    %v273 = vand.u32 %v22, 4294901760
    %274 = vmatpush1.msra.mxu0 %v273
    %275 = vmatprep.subr.mxu0 0.0
    %276 = vmatpush1.msra.mxu0 0.0
    %277 = vmatprep.subr.mxu0 0.0
    %278 = vmatpush1.msra.mxu0 0.0
    %279 = vmatprep.subr.mxu0 0.0
    %280 = vmatpush1.msra.mxu0 0.0
    %281 = vmatprep.subr.mxu0 0.0
    %282 = vmatpush1.msra.mxu0 0.0
    %283 = vmatprep.subr.mxu0 0.0
    %284 = vmatpush1.msra.mxu0 0.0
    %285 = vmatprep.subr.mxu0 0.0
    %286 = vmatpush1.msra.mxu0 0.0
    %287 = vmatprep.subr.mxu0 0.0
    %288 = vmatpush1.msra.mxu0 0.0
    %289 = vmatprep.subr.mxu0 0.0
    %290 = vmatpush1.msra.mxu0 0.0
    %291 = vmatprep.subr.mxu0 0.0
    %292 = vmatpush1.msra.mxu0 0.0
    %293 = vmatprep.subr.mxu0 0.0
    %294 = vmatpush1.msra.mxu0 0.0
    %295 = vmatprep.subr.mxu0 0.0
    %296 = vmatpush1.msra.mxu0 0.0
    %297 = vmatprep.subr.mxu0 0.0
    %298 = vmatpush1.msra.mxu0 0.0
    %299 = vmatprep.subr.mxu0 0.0
    %300 = vmatpush1.msra.mxu0 0.0
    %301 = vmatprep.subr.mxu0 0.0
    %302 = vmatpush1.msra.mxu0 0.0
    %303 = vmatprep.subr.mxu0 0.0
    %304 = vmatpush1.msra.mxu0 0.0
    %305 = vmatprep.subr.mxu0 0.0
    %306 = vmatpush1.msra.mxu0 0.0
    %307 = vmatprep.subr.mxu0 0.0
    %308 = vmatpush1.msra.mxu0 0.0
    %309 = vmatprep.subr.mxu0 0.0
    %310 = vmatpush1.msra.mxu0 0.0
    %311 = vmatprep.subr.mxu0 0.0
    %312 = vmatpush1.msra.mxu0 0.0
    %313 = vmatprep.subr.mxu0 0.0
    %314 = vmatpush1.msra.mxu0 0.0
    %315 = vmatprep.subr.mxu0 0.0
    %316 = vmatpush1.msra.mxu0 0.0
    %317 = vmatprep.subr.mxu0 0.0
    %318 = vmatpush1.msra.mxu0 0.0
    %319 = vmatprep.subr.mxu0 0.0
    %320 = vmatpush1.msra.mxu0 0.0
    %321 = vmatprep.subr.mxu0 0.0
    %322 = vmatpush1.msra.mxu0 0.0
    %323 = vmatprep.subr.mxu0 0.0
    %324 = vmatpush1.msra.mxu0 0.0
    %325 = vmatprep.subr.mxu0 0.0
    %326 = vmatpush1.msra.mxu0 0.0
    %327 = vmatprep.subr.mxu0 0.0
    %328 = vmatpush1.msra.mxu0 0.0
    %329 = vmatprep.subr.mxu0 0.0
    %330 = vmatpush1.msra.mxu0 0.0
    %331 = vmatprep.subr.mxu0 0.0
    %332 = vmatpush1.msra.mxu0 0.0
    %333 = vmatprep.mubr.f32.mxu0 0.0
    %v334 = vand.u32 %v18, 4294901760
    %v335 = vsub.f32 %v18, %v334
    %v336 = vand.u32 %v335, 4294901760
    %337 = vmatmul.mubr.f32.gmra.mrb[0].mxu0 %v336
    %v338 = vpop.f32.mrb[0].mxu0
    %v339 = vadd.f32 %v263, %v338
    %v340 = vpop.f32.mrb[0].mxu0
    %341 = vdwg.mxu0
    %342 = vmatprep.subr.mxu0 0.0
    %v343 = vand.u32 %v13, 4294901760
    %v344 = vsub.f32 %v13, %v343
    %v345 = vand.u32 %v344, 4294901760
    %346 = vmatpush1.msra.mxu0 %v345
    %347 = vmatprep.subr.mxu0 0.0
    %v348 = vand.u32 %v14, 4294901760
    %v349 = vsub.f32 %v14, %v348
    %v350 = vand.u32 %v349, 4294901760
    %351 = vmatpush1.msra.mxu0 %v350
    %352 = vmatprep.subr.mxu0 0.0
    %v353 = vand.u32 %v22, 4294901760
    %v354 = vsub.f32 %v22, %v353
    %v355 = vand.u32 %v354, 4294901760
    %356 = vmatpush1.msra.mxu0 %v355
    %357 = vmatprep.subr.mxu0 0.0
    %358 = vmatpush1.msra.mxu0 0.0
    %359 = vmatprep.subr.mxu0 0.0
    %360 = vmatpush1.msra.mxu0 0.0
    %361 = vmatprep.subr.mxu0 0.0
    %362 = vmatpush1.msra.mxu0 0.0
    %363 = vmatprep.subr.mxu0 0.0
    %364 = vmatpush1.msra.mxu0 0.0
    %365 = vmatprep.subr.mxu0 0.0
    %366 = vmatpush1.msra.mxu0 0.0
    %367 = vmatprep.subr.mxu0 0.0
    %368 = vmatpush1.msra.mxu0 0.0
    %369 = vmatprep.subr.mxu0 0.0
    %370 = vmatpush1.msra.mxu0 0.0
    %371 = vmatprep.subr.mxu0 0.0
    %372 = vmatpush1.msra.mxu0 0.0
    %373 = vmatprep.subr.mxu0 0.0
    %374 = vmatpush1.msra.mxu0 0.0
    %375 = vmatprep.subr.mxu0 0.0
    %376 = vmatpush1.msra.mxu0 0.0
    %377 = vmatprep.subr.mxu0 0.0
    %378 = vmatpush1.msra.mxu0 0.0
    %379 = vmatprep.subr.mxu0 0.0
    %380 = vmatpush1.msra.mxu0 0.0
    %381 = vmatprep.subr.mxu0 0.0
    %382 = vmatpush1.msra.mxu0 0.0
    %383 = vmatprep.subr.mxu0 0.0
    %384 = vmatpush1.msra.mxu0 0.0
    %385 = vmatprep.subr.mxu0 0.0
    %386 = vmatpush1.msra.mxu0 0.0
    %387 = vmatprep.subr.mxu0 0.0
    %388 = vmatpush1.msra.mxu0 0.0
    %389 = vmatprep.subr.mxu0 0.0
    %390 = vmatpush1.msra.mxu0 0.0
    %391 = vmatprep.subr.mxu0 0.0
    %392 = vmatpush1.msra.mxu0 0.0
    %393 = vmatprep.subr.mxu0 0.0
    %394 = vmatpush1.msra.mxu0 0.0
    %395 = vmatprep.subr.mxu0 0.0
    %396 = vmatpush1.msra.mxu0 0.0
    %397 = vmatprep.subr.mxu0 0.0
    %398 = vmatpush1.msra.mxu0 0.0
    %399 = vmatprep.subr.mxu0 0.0
    %400 = vmatpush1.msra.mxu0 0.0
    %401 = vmatprep.subr.mxu0 0.0
    %402 = vmatpush1.msra.mxu0 0.0
    %403 = vmatprep.subr.mxu0 0.0
    %404 = vmatpush1.msra.mxu0 0.0
    %405 = vmatprep.subr.mxu0 0.0
    %406 = vmatpush1.msra.mxu0 0.0
    %407 = vmatprep.subr.mxu0 0.0
    %408 = vmatpush1.msra.mxu0 0.0
    %409 = vmatprep.subr.mxu0 0.0
    %410 = vmatpush1.msra.mxu0 0.0
    %411 = vmatprep.subr.mxu0 0.0
    %412 = vmatpush1.msra.mxu0 0.0
    %413 = vmatprep.subr.mxu0 0.0
    %414 = vmatpush1.msra.mxu0 0.0
    %415 = vmatprep.mubr.f32.mxu0 0.0
    %v416 = vand.u32 %v18, 4294901760
    %417 = vmatmul.mubr.f32.gmra.mrb[0].mxu0 %v416
    %v418 = vpop.f32.mrb[0].mxu0
    %v419 = vadd.f32 %v339, %v418
    %v420 = vpop.f32.mrb[0].mxu0
    %421 = vdwg.mxu0
    %422 = vmatprep.subr.mxu0 0.0
    %v423 = vand.u32 %v13, 4294901760
    %424 = vmatpush1.msra.mxu0 %v423
    %425 = vmatprep.subr.mxu0 0.0
    %v426 = vand.u32 %v14, 4294901760
    %427 = vmatpush1.msra.mxu0 %v426
    %428 = vmatprep.subr.mxu0 0.0
    %v429 = vand.u32 %v22, 4294901760
    %430 = vmatpush1.msra.mxu0 %v429
    %431 = vmatprep.subr.mxu0 0.0
    %432 = vmatpush1.msra.mxu0 0.0
    %433 = vmatprep.subr.mxu0 0.0
    %434 = vmatpush1.msra.mxu0 0.0
    %435 = vmatprep.subr.mxu0 0.0
    %436 = vmatpush1.msra.mxu0 0.0
    %437 = vmatprep.subr.mxu0 0.0
    %438 = vmatpush1.msra.mxu0 0.0
    %439 = vmatprep.subr.mxu0 0.0
    %440 = vmatpush1.msra.mxu0 0.0
    %441 = vmatprep.subr.mxu0 0.0
    %442 = vmatpush1.msra.mxu0 0.0
    %443 = vmatprep.subr.mxu0 0.0
    %444 = vmatpush1.msra.mxu0 0.0
    %445 = vmatprep.subr.mxu0 0.0
    %446 = vmatpush1.msra.mxu0 0.0
    %447 = vmatprep.subr.mxu0 0.0
    %448 = vmatpush1.msra.mxu0 0.0
    %449 = vmatprep.subr.mxu0 0.0
    %450 = vmatpush1.msra.mxu0 0.0
    %451 = vmatprep.subr.mxu0 0.0
    %452 = vmatpush1.msra.mxu0 0.0
    %453 = vmatprep.subr.mxu0 0.0
    %454 = vmatpush1.msra.mxu0 0.0
    %455 = vmatprep.subr.mxu0 0.0
    %456 = vmatpush1.msra.mxu0 0.0
    %457 = vmatprep.subr.mxu0 0.0
    %458 = vmatpush1.msra.mxu0 0.0
    %459 = vmatprep.subr.mxu0 0.0
    %460 = vmatpush1.msra.mxu0 0.0
    %461 = vmatprep.subr.mxu0 0.0
    %462 = vmatpush1.msra.mxu0 0.0
    %463 = vmatprep.subr.mxu0 0.0
    %464 = vmatpush1.msra.mxu0 0.0
    %465 = vmatprep.subr.mxu0 0.0
    %466 = vmatpush1.msra.mxu0 0.0
    %467 = vmatprep.subr.mxu0 0.0
    %468 = vmatpush1.msra.mxu0 0.0
    %469 = vmatprep.subr.mxu0 0.0
    %470 = vmatpush1.msra.mxu0 0.0
    %471 = vmatprep.subr.mxu0 0.0
    %472 = vmatpush1.msra.mxu0 0.0
    %473 = vmatprep.subr.mxu0 0.0
    %474 = vmatpush1.msra.mxu0 0.0
    %475 = vmatprep.subr.mxu0 0.0
    %476 = vmatpush1.msra.mxu0 0.0
    %477 = vmatprep.subr.mxu0 0.0
    %478 = vmatpush1.msra.mxu0 0.0
    %479 = vmatprep.subr.mxu0 0.0
    %480 = vmatpush1.msra.mxu0 0.0
    %481 = vmatprep.subr.mxu0 0.0
    %482 = vmatpush1.msra.mxu0 0.0
    %483 = vmatprep.subr.mxu0 0.0
    %484 = vmatpush1.msra.mxu0 0.0
    %485 = vmatprep.subr.mxu0 0.0
    %486 = vmatpush1.msra.mxu0 0.0
    %487 = vmatprep.subr.mxu0 0.0
    %488 = vmatpush1.msra.mxu0 0.0
    %489 = vmatprep.mubr.f32.mxu0 0.0
    %v490 = vand.u32 %v18, 4294901760
    %491 = vmatmul.mubr.f32.gmra.mrb[0].mxu0 %v490
    %v492 = vpop.f32.mrb[0].mxu0
    %v493 = vadd.f32 %v419, %v492
    %v494 = vpop.f32.mrb[0].mxu0
    %495 = vdwg.mxu0
    %vm496 = vcmask 130048
    %497 = vst.msk [vmem:[#allocation2] sm:$0xff] %vm496, %v493
    // Predicated region
    $region10: #{tpu_custom_call.1} parent=1 // pred_check
      _
    $region11: #{tpu_custom_call.1} parent=1 // pred_check_branch
      %499 = sbr.rel (0) target = $region13
    $region12: #{tpu_custom_call.1} parent=1 // pred_region
      %s501 = ssub.s32 128, 128
      %502 = vsyncadd [#allocation3], %s501
      %s504 = sshll.u32 [#allocation2], 4
      %s505 = int_to_ptr.vmem [resolvable:$true] %s504
      %507 = dma.vmem_to_hbm [thread:$0]  %s505, 128, %s2, [#allocation3]
    $region13: #{tpu_custom_call.1} parent=1 // pred_fallthru
      _
    // Predicated region
    $region14: #{tpu_custom_call.1} parent=1 // pred_check
      _
    $region15: #{tpu_custom_call.1} parent=1 // pred_check_branch
      %509 = sbr.rel (0) target = $region17
    $region16: #{tpu_custom_call.1} parent=1 // pred_region
      %510 = dma.done [#allocation3], 128
    $region17: #{tpu_custom_call.1} parent=1 // pred_fallthru
      _
    %511 = vsyncpa [#allocation3], 1

</llo_original>
